<compile_context>
chip_gen: v7x
topology: tpu7x:2x2x1
jax: 0.10.0
libtpu: 0.0.40
codegen_flags: <defaults>
</compile_context>

<pallas_src>
import functools

import jax
import jax.numpy as jnp
from jax.experimental import pallas as pl
from jax.experimental.pallas import tpu as pltpu


def _round_up(x: int, m: int) -> int:
    return (x + m - 1) // m * m


# ---------------------------------------------------------------------------
# Parameter prep (done ONCE, outside the per-call forward path)
# ---------------------------------------------------------------------------
def prepare_linear_params(weight, bias):
    """weight: (OUT, IN) torch layout -> wt: (IN, OUT); bias -> (1, OUT)."""
    return weight.T, bias.reshape(1, -1)


# ---------------------------------------------------------------------------
# Kernels
# ---------------------------------------------------------------------------
def linear_small_kernel(x_ref, wt_ref, b_ref, o_ref):
    # x_ref: (M, K), wt_ref: (K, N), b_ref: (1, N), o_ref: (M, N) -- full arrays.
    o_ref[...] = (
        jnp.dot(x_ref[...], wt_ref[...], preferred_element_type=jnp.float32)
        + b_ref[...].astype(jnp.float32)
    ).astype(o_ref.dtype)


def linear_tiled_kernel(x_ref, wt_ref, b_ref, o_ref):
    # x_ref: (tm, tk), wt_ref: (tk, tn), b_ref: (1, tn), o_ref: (tm, tn) f32.
    # o_ref is resident across the K axis (index_map (i, j) independent of k),
    # so we accumulate directly into it -- no scratch, no epilogue copy.
    k = pl.program_id(2)

    @pl.when(k == 0)
    def _init():
        o_ref[...] = jnp.zeros_like(o_ref)

    o_ref[...] += jnp.dot(x_ref[...], wt_ref[...],
                          preferred_element_type=jnp.float32)

    @pl.when(k == pl.num_programs(2) - 1)
    def _finalize():
        o_ref[...] += b_ref[...].astype(o_ref.dtype)


# ---------------------------------------------------------------------------
# Forward
# ---------------------------------------------------------------------------
# Fast path whenever everything fits comfortably in VMEM untiled.
_SMALL_BYTES_LIMIT = 4 << 20  # 4 MiB, well under scoped VMEM on all generations


@functools.partial(jax.jit, static_argnames=("tm", "tn", "tk"))
def linear_pallas(x, wt, b2, *, tm=256, tn=256, tk=512):
    """y = x @ wt + b2, with wt = weight.T (IN, OUT) and b2 = bias[(1, OUT)]."""
    M, K = x.shape
    N = wt.shape[1]
    itemsize = x.dtype.itemsize
    true_flops = 2 * M * N * K
    true_bytes = (M * K + K * N + N + M * N) * itemsize

    # -------- small-shape fast path (the actual nn.Linear(4,4) workload) -----
    if (M * K + K * N + M * N + N) * itemsize <= _SMALL_BYTES_LIMIT:
        return pl.pallas_call(
            linear_small_kernel,
            out_shape=jax.ShapeDtypeStruct((M, N), x.dtype),
            cost_estimate=pl.CostEstimate(
                flops=true_flops, transcendentals=0, bytes_accessed=true_bytes),
        )(x, wt, b2)

    # -------- generic tiled path (large shapes) -------------------------------
    # Clamp tiles to (padded) problem dims while keeping lane/sublane alignment.
    tm = min(tm, _round_up(M, 8))
    tn = min(tn, _round_up(N, 128))
    tk = min(tk, _round_up(K, 128))

    Mp, Np, Kp = _round_up(M, tm), _round_up(N, tn), _round_up(K, tk)

    # Zero-padding is exact for a linear layer (padded K contributes zeros;
    # padded M/N rows/cols are sliced off below).
    # TODO(synk): for production, hoist the weight/bias padding into
    # prepare_linear_params so only x is padded per call.
    xp = jnp.pad(x, ((0, Mp - M), (0, Kp - K)))
    wp = jnp.pad(wt, ((0, Kp - K), (0, Np - N)))
    bp = jnp.pad(b2, ((0, 0), (0, Np - N)))

    grid = (Mp // tm, Np // tn, Kp // tk)

    # VMEM budget: double-buffered x/W tiles + resident f32 output tile + bias.
    vmem_needed = (2 * (tm * tk + tk * tn) * itemsize
                   + tm * tn * 4 + tn * 4 + (1 << 20))
    vmem_limit = min(max(32 << 20, int(vmem_needed)), 60 << 20)  # v7x-safe

    out = pl.pallas_call(
        linear_tiled_kernel,
        out_shape=jax.ShapeDtypeStruct((Mp, Np), jnp.float32),
        grid=grid,
        in_specs=[
            pl.BlockSpec((tm, tk), lambda i, j, k: (i, k)),   # x tile
            pl.BlockSpec((tk, tn), lambda i, j, k: (k, j)),   # W^T tile (IN, OUT)
            pl.BlockSpec((1, tn), lambda i, j, k: (0, j)),    # bias tile
        ],
        out_specs=pl.BlockSpec((tm, tn), lambda i, j, k: (i, j)),
        compiler_params=pltpu.CompilerParams(
            dimension_semantics=("parallel", "parallel", "arbitrary"),
            vmem_limit_bytes=vmem_limit,
        ),
        cost_estimate=pl.CostEstimate(
            flops=true_flops, transcendentals=0, bytes_accessed=true_bytes),
    )(xp, wp, bp)

    return out[:M, :N].astype(x.dtype)


if __name__ == "__main__":
    key = jax.random.PRNGKey(0)
    k_x, k_w, k_b = jax.random.split(key, 3)

    IN_FEATURES, OUT_FEATURES = 4, 4
    BATCH = 8

    # Deterministic parameter init mirroring nn.Linear's U(-1/sqrt(in), 1/sqrt(in)).
    bound = 1.0 / (IN_FEATURES ** 0.5)
    weight = jax.random.uniform(
        k_w, (OUT_FEATURES, IN_FEATURES), jnp.float32, -bound, bound)
    bias = jax.random.uniform(
        k_b, (OUT_FEATURES,), jnp.float32, -bound, bound)

    x = jax.random.normal(k_x, (BATCH, IN_FEATURES), jnp.float32)

    # One-time parameter prep (transpose + bias reshape), hoisted out of forward.
    wt, b2 = prepare_linear_params(weight, bias)

    y = linear_pallas(x, wt, b2)
    jax.block_until_ready(y)

    # Reference check against plain JAX (matches torch: x @ W^T + b).
    y_ref = x @ weight.T + bias
    assert y.shape == y_ref.shape, "shape mismatch vs reference"
    assert jnp.allclose(y, y_ref, atol=1e-5, rtol=1e-5), "mismatch vs reference"

    print("KERNEL_OK")
</pallas_src>

<mosaic_0001>
module attributes {stable_mosaic.version = 11 : i64} {
  func.func @linear_small_kernel(%arg0: memref<8x4xf32, #tpu.memory_space<vmem>>, %arg1: memref<4x4xf32, #tpu.memory_space<vmem>>, %arg2: memref<1x4xf32, #tpu.memory_space<vmem>>, %arg3: memref<8x4xf32, #tpu.memory_space<vmem>>) attributes {dimension_semantics = [], scalar_prefetch = 0 : i64, scratch_operands = 0 : i64, tpu.core_type = #tpu.core_type<tc>} {
    %c0 = arith.constant 0 : index
    %c0_0 = arith.constant 0 : index
    %0 = vector.load %arg0[%c0, %c0_0] : memref<8x4xf32, #tpu.memory_space<vmem>>, vector<8x4xf32>
    %c0_1 = arith.constant 0 : index
    %c0_2 = arith.constant 0 : index
    %1 = vector.load %arg1[%c0_1, %c0_2] : memref<4x4xf32, #tpu.memory_space<vmem>>, vector<4x4xf32>
    %cst = arith.constant dense<0.000000e+00> : vector<8x4xf32>
    %2 = tpu.matmul %0, %1, %cst {dimension_numbers = #tpu.dot_dimension_numbers<[1], [0], [0], [1], [0, 0, 1, 1], [], []>} : vector<8x4xf32>, vector<4x4xf32>, vector<8x4xf32> -> vector<8x4xf32>
    %c0_3 = arith.constant 0 : index
    %c0_4 = arith.constant 0 : index
    %3 = vector.load %arg2[%c0_3, %c0_4] : memref<1x4xf32, #tpu.memory_space<vmem>>, vector<1x4xf32>
    %4 = vector.broadcast %3 : vector<1x4xf32> to vector<8x4xf32>
    %5 = arith.addf %2, %4 : vector<8x4xf32>
    %c0_5 = arith.constant 0 : index
    %c0_6 = arith.constant 0 : index
    %6 = vector.load %arg3[%c0_5, %c0_6] : memref<8x4xf32, #tpu.memory_space<vmem>>, vector<8x4xf32>
    tpu.vector_store %arg3[%c0_5, %c0_6], %5 {strides = array<i32>} : memref<8x4xf32, #tpu.memory_space<vmem>>, vector<8x4xf32>,
    return
  }
}

</mosaic_0001>

<llo_original>
// kernel: linear_pallas.1
$region0: #{linear_pallas.1}
  #allocation0 [shape = 'u32[]', space=smem, size = 0x4, offset = 0x4, fixed_abs, tag = 'smem constant byte address 0x4 - core index']
  #allocation1 [shape = 'u32[144,128]{1,0:T(1,128)}', space=vmem, size = 0x12000, scoped, tag = 'internal scratch']
  %s0 = inlined_call_operand.vmem [shape: f32[8,4], index: 0, kind: input, shape index: {}]
  %s1 = inlined_call_operand.vmem [shape: f32[4,4], index: 1, kind: input, shape index: {}]
  %s2 = inlined_call_operand.vmem [shape: f32[1,4], index: 2, kind: input, shape index: {}]
  %s3 = inlined_call_operand.vmem [shape: f32[8,4], index: 3, kind: output, shape index: {}]
  %s4 = sld [smem:[#allocation0]]
  $region22: #{linear_pallas.1} parent=0
    _
  %s6 = ssub.s32 1, %s4
  %s7 = scalar_select 0, %s6, %s4
  // Predicated region
  $region2: #{linear_pallas.1} parent=0 // pred_check
    _
  $region3: #{linear_pallas.1} parent=0 // pred_check_branch
    %9 = sbr.rel (0) target = $region5
  $region4: #{linear_pallas.1} parent=0 // pred_region
    _
  $region5: #{linear_pallas.1} parent=0 // pred_fallthru
    _
  // Predicated region
  $region6: #{linear_pallas.1} parent=0 // pred_check
    _
  $region7: #{linear_pallas.1} parent=0 // pred_check_branch
    %11 = sbr.rel (0) target = $region9
  $region8: #{linear_pallas.1} parent=0 // pred_region
    _
  $region9: #{linear_pallas.1} parent=0 // pred_fallthru
    _
  // Predicated region
  $region10: #{linear_pallas.1} parent=0 // pred_check
    _
  $region11: #{linear_pallas.1} parent=0 // pred_check_branch
    %13 = sbr.rel (0) target = $region13
  $region12: #{linear_pallas.1} parent=0 // pred_region
    _
  $region13: #{linear_pallas.1} parent=0 // pred_fallthru
    _
  %v14 = vld [vmem:[%s0] sm:$0xff]
  %v15 = vld [vmem:[%s1] sm:$0xf]
  %v16 = vld [vmem:[%s2] sm:$0x1]
  %v18 = vlaneseq
  %v19 = vshrl.u32 %v18, 7
  %v20 = vsub.s32 0, %v19
  %v21 = vrot.slane %v16, %v20
  %vm23 = vcmask 31744
  %v25 = vsel %vm23, %v14, 0
  %vm27 = vcmask 1043456
  %v29 = vsel %vm27, %v15, 0
  %31 = vmatprep.subr.mxu0 0.0
  %32 = vmatpush1.msra.mxu0 %v29
  %33 = vmatprep.subr.mxu0 0.0
  %34 = vmatpush1.msra.mxu0 0.0
  %35 = vmatprep.subr.mxu0 0.0
  %36 = vmatpush1.msra.mxu0 0.0
  %37 = vmatprep.subr.mxu0 0.0
  %38 = vmatpush1.msra.mxu0 0.0
  %39 = vmatprep.subr.mxu0 0.0
  %40 = vmatpush1.msra.mxu0 0.0
  %41 = vmatprep.subr.mxu0 0.0
  %42 = vmatpush1.msra.mxu0 0.0
  %43 = vmatprep.subr.mxu0 0.0
  %44 = vmatpush1.msra.mxu0 0.0
  %45 = vmatprep.subr.mxu0 0.0
  %46 = vmatpush1.msra.mxu0 0.0
  %47 = vmatprep.subr.mxu0 0.0
  %48 = vmatpush1.msra.mxu0 0.0
  %49 = vmatprep.subr.mxu0 0.0
  %50 = vmatpush1.msra.mxu0 0.0
  %51 = vmatprep.subr.mxu0 0.0
  %52 = vmatpush1.msra.mxu0 0.0
  %53 = vmatprep.subr.mxu0 0.0
  %54 = vmatpush1.msra.mxu0 0.0
  %55 = vmatprep.subr.mxu0 0.0
  %56 = vmatpush1.msra.mxu0 0.0
  %57 = vmatprep.subr.mxu0 0.0
  %58 = vmatpush1.msra.mxu0 0.0
  %59 = vmatprep.subr.mxu0 0.0
  %60 = vmatpush1.msra.mxu0 0.0
  %61 = vmatprep.subr.mxu0 0.0
  %62 = vmatpush1.msra.mxu0 0.0
  %63 = vmatprep.subr.mxu0 0.0
  %64 = vmatpush1.msra.mxu0 0.0
  %65 = vmatprep.subr.mxu0 0.0
  %66 = vmatpush1.msra.mxu0 0.0
  %67 = vmatprep.subr.mxu0 0.0
  %68 = vmatpush1.msra.mxu0 0.0
  %69 = vmatprep.subr.mxu0 0.0
  %70 = vmatpush1.msra.mxu0 0.0
  %71 = vmatprep.subr.mxu0 0.0
  %72 = vmatpush1.msra.mxu0 0.0
  %73 = vmatprep.subr.mxu0 0.0
  %74 = vmatpush1.msra.mxu0 0.0
  %75 = vmatprep.subr.mxu0 0.0
  %76 = vmatpush1.msra.mxu0 0.0
  %77 = vmatprep.subr.mxu0 0.0
  %78 = vmatpush1.msra.mxu0 0.0
  %79 = vmatprep.subr.mxu0 0.0
  %80 = vmatpush1.msra.mxu0 0.0
  %81 = vmatprep.subr.mxu0 0.0
  %82 = vmatpush1.msra.mxu0 0.0
  %83 = vmatprep.subr.mxu0 0.0
  %84 = vmatpush1.msra.mxu0 0.0
  %85 = vmatprep.subr.mxu0 0.0
  %86 = vmatpush1.msra.mxu0 0.0
  %87 = vmatprep.subr.mxu0 0.0
  %88 = vmatpush1.msra.mxu0 0.0
  %89 = vmatprep.subr.mxu0 0.0
  %90 = vmatpush1.msra.mxu0 0.0
  %91 = vmatprep.subr.mxu0 0.0
  %92 = vmatpush1.msra.mxu0 0.0
  %93 = vmatprep.subr.mxu0 0.0
  %94 = vmatpush1.msra.mxu0 0.0
  %95 = vmatprep.mubr.f32.mxu0 0.0
  %96 = vmatmul.mubr.f32.gmra.mrb[0].mxu0 %v25
  %v97 = vpop.f32.mrb[0].mxu0
  %v98 = vadd.f32 %v21, %v97
  %v99 = vpop.f32.mrb[0].mxu0
  %100 = vdwg.mxu0
  %101 = vst.msk [vmem:[%s3] sm:$0xff] %vm23, %v98
  // Predicated region
  $region14: #{linear_pallas.1} parent=0 // pred_check
    _
  $region15: #{linear_pallas.1} parent=0 // pred_check_branch
    %103 = sbr.rel (0) target = $region17
  $region16: #{linear_pallas.1} parent=0 // pred_region
    _
  $region17: #{linear_pallas.1} parent=0 // pred_fallthru
    _
  // Predicated region
  $region18: #{linear_pallas.1} parent=0 // pred_check
    _
  $region19: #{linear_pallas.1} parent=0 // pred_check_branch
    %105 = sbr.rel (0) target = $region21
  $region20: #{linear_pallas.1} parent=0 // pred_region
    _
  $region21: #{linear_pallas.1} parent=0 // pred_fallthru
    _

</llo_original>
